<compile_context>
chip_gen: v5e
topology: v5e:2x2
jax: 0.10.0
libtpu: 0.0.40
codegen_flags: <defaults>
</compile_context>

<pallas_src>
import jax
import jax.numpy as jnp
from jax.experimental import pallas as pl
from jax.experimental.pallas import tpu as pltpu

INPUT_DIM = 10
HIDDEN_DIM = 64
OUTPUT_DIM = 3

HIDDEN_PAD = 128   # lane-dense hidden width (64 padded with zero columns/rows)
OUT_PAD = 8        # narrow output width; lanes 3..7 are padding
NEG_BIAS = -1e30   # finite large-negative bias for padded logits -> exp() == 0, no inf-inf NaN


def _round_up(n, m):
    return ((n + m - 1) // m) * m


def pad_params(w1, b1, w2, b2):
    """Pad raw params to kernel layout ONCE (hoisted out of the per-call forward path).

    w1: (INPUT_DIM, HIDDEN_DIM), b1: (1, HIDDEN_DIM),
    w2: (HIDDEN_DIM, OUTPUT_DIM), b2: (1, OUTPUT_DIM)   (transposed vs. torch Linear.weight)
    """
    w1p = jnp.zeros((INPUT_DIM, HIDDEN_PAD), jnp.float32).at[:, :HIDDEN_DIM].set(w1)
    b1p = jnp.zeros((1, HIDDEN_PAD), jnp.float32).at[:, :HIDDEN_DIM].set(b1)
    w2p = jnp.zeros((HIDDEN_PAD, OUT_PAD), jnp.float32).at[:HIDDEN_DIM, :OUTPUT_DIM].set(w2)
    b2p = jnp.full((1, OUT_PAD), NEG_BIAS, jnp.float32).at[:, :OUTPUT_DIM].set(b2)
    return w1p, b1p, w2p, b2p


def policy_net_kernel(x_ref, w1_ref, b1_ref, w2_ref, b2_ref, out_ref):
    # x_ref:  (TB, INPUT_DIM)          f32
    # w1_ref: (INPUT_DIM, HIDDEN_PAD)  f32  (cols >= 64 are zero)
    # b1_ref: (1, HIDDEN_PAD)          f32  (cols >= 64 are zero)
    # w2_ref: (HIDDEN_PAD, OUT_PAD)    f32  (rows >= 64 and cols >= 3 are zero)
    # b2_ref: (1, OUT_PAD)             f32  (cols >= 3 are -1e30)
    # out_ref:(TB, OUT_PAD)            f32
    x = x_ref[...]

    # Linear(10, 64) + ReLU, computed lane-dense at width 128 (padded cols stay 0 after ReLU).
    h = jnp.dot(x, w1_ref[...], preferred_element_type=jnp.float32) + b1_ref[...]
    h = jnp.maximum(h, 0.0)

    # Linear(64, 3) -> 8-lane logits: padded hidden rows of w2 are 0, padded output
    # lanes carry a -1e30 bias so exp() underflows to exactly 0.
    logits = jnp.dot(h, w2_ref[...], preferred_element_type=jnp.float32) + b2_ref[...]

    # Numerically stable softmax over 8 lanes (only 3 are real).
    m = jnp.max(logits, axis=-1, keepdims=True)
    e = jnp.exp(logits - m)
    denom = jnp.sum(e, axis=-1, keepdims=True)
    # reciprocal-then-multiply (EUP slot); matches jax.nn.softmax to ~1e-7, not bit-exact.
    out_ref[...] = e * pl.reciprocal(denom, approx=False)


def _vmem_limit_bytes(tb):
    # VMEM budget PER GRID STEP, using lane-PADDED sizes (last dim rounds up to 128):
    #   x   : 2 buffers * tb * 128 lanes * 4 B   (10 -> 128 lane padding)
    #   out : 2 buffers * tb * 128 lanes * 4 B   ( 8 -> 128 lane padding)
    #   h / logits / e intermediates: ~3 * tb * 128 * 4 B
    per_row = (2 + 2 + 3) * 128 * 4
    need = tb * per_row + (1 << 20)  # + weights (~70 KiB) and slack
    # Floor at the 32 MiB scoped default (raises v5e's 16 MiB default); cap well under
    # v5e/v6e's 128 MiB physical.  Note v7x has only 64 MiB physical VMEM.
    return int(min(max(need, 32 << 20), 96 << 20))


def policy_net_forward(x, w1p, b1p, w2p, b2p, *, block_rows=4096):
    """x: (B, INPUT_DIM) f32 -> (B, OUTPUT_DIM) f32 softmax probabilities.

    Takes the PRE-PADDED params produced by pad_params() (padding hoisted out of the
    per-call path).
    """
    B = x.shape[0]
    x = x.astype(jnp.float32)

    # Batch tile: multiple of 8 (sublane), capped by block_rows.
    rows = _round_up(B, 8)
    tb = min(_round_up(block_rows, 8), rows)
    # v7x megacore: if the batch is large but would fit in a single step, split it so the
    # "parallel" grid axis has >= 2 steps and both TensorCores get work.
    if rows >= 512 and rows <= tb:
        tb = _round_up(pl.cdiv(rows, 2), 8)
    tb = max(8, _round_up(tb, 8))

    b_pad = _round_up(B, tb)
    if b_pad != B:
        x = jnp.pad(x, ((0, b_pad - B), (0, 0)))

    grid = (b_pad // tb,)

    out_padded = pl.pallas_call(
        policy_net_kernel,
        out_shape=jax.ShapeDtypeStruct((b_pad, OUT_PAD), jnp.float32),
        grid=grid,
        in_specs=[
            pl.BlockSpec((tb, INPUT_DIM), lambda i: (i, 0)),          # x: tiled over batch
            pl.BlockSpec((INPUT_DIM, HIDDEN_PAD), lambda i: (0, 0)),  # weights stay VMEM-resident
            pl.BlockSpec((1, HIDDEN_PAD), lambda i: (0, 0)),
            pl.BlockSpec((HIDDEN_PAD, OUT_PAD), lambda i: (0, 0)),
            pl.BlockSpec((1, OUT_PAD), lambda i: (0, 0)),
        ],
        out_specs=pl.BlockSpec((tb, OUT_PAD), lambda i: (i, 0)),
        compiler_params=pltpu.CompilerParams(
            dimension_semantics=("parallel",),            # megacore sharding on v7x
            vmem_limit_bytes=_vmem_limit_bytes(tb),
        ),
    )(x, w1p, b1p, w2p, b2p)

    return out_padded[:B, :OUTPUT_DIM]


def init_params(key):
    """Deterministic init mimicking PyTorch nn.Linear default (U(-1/sqrt(fan_in), 1/sqrt(fan_in)))."""
    k1, k2, k3, k4 = jax.random.split(key, 4)
    bound1 = 1.0 / jnp.sqrt(jnp.float32(INPUT_DIM))
    bound2 = 1.0 / jnp.sqrt(jnp.float32(HIDDEN_DIM))
    w1 = jax.random.uniform(k1, (INPUT_DIM, HIDDEN_DIM), jnp.float32, -bound1, bound1)
    b1 = jax.random.uniform(k2, (1, HIDDEN_DIM), jnp.float32, -bound1, bound1)
    w2 = jax.random.uniform(k3, (HIDDEN_DIM, OUTPUT_DIM), jnp.float32, -bound2, bound2)
    b2 = jax.random.uniform(k4, (1, OUTPUT_DIM), jnp.float32, -bound2, bound2)
    return w1, b1, w2, b2


def _reference(x, w1, b1, w2, b2):
    h = jnp.maximum(x @ w1 + b1, 0.0)
    return jax.nn.softmax(h @ w2 + b2, axis=-1)


if __name__ == "__main__":
    key = jax.random.PRNGKey(0)
    kx, kp, kx2 = jax.random.split(key, 3)
    w1, b1, w2, b2 = init_params(kp)
    # Pad params ONCE (hoisted out of the forward path).
    w1p, b1p, w2p, b2p = pad_params(w1, b1, w2, b2)

    # Small batch (single grid step).
    B = 8
    x = jax.random.normal(kx, (B, INPUT_DIM), jnp.float32)
    out = jax.block_until_ready(policy_net_forward(x, w1p, b1p, w2p, b2p))
    ref = _reference(x, w1, b1, w2, b2)
    assert out.shape == (B, OUTPUT_DIM)
    assert jnp.allclose(out, ref, atol=1e-5, rtol=1e-5)
    assert jnp.allclose(jnp.sum(out, axis=-1), 1.0, atol=1e-5)

    # Non-multiple batch exercising a multi-step grid (grid=(4,), weights resident).
    B2 = 200
    x2 = jax.random.normal(kx2, (B2, INPUT_DIM), jnp.float32)
    out2 = jax.block_until_ready(policy_net_forward(x2, w1p, b1p, w2p, b2p, block_rows=64))
    ref2 = _reference(x2, w1, b1, w2, b2)
    assert out2.shape == (B2, OUTPUT_DIM)
    assert jnp.allclose(out2, ref2, atol=1e-5, rtol=1e-5)
    assert jnp.allclose(jnp.sum(out2, axis=-1), 1.0, atol=1e-5)

    print("KERNEL_OK")
</pallas_src>

<mosaic_0001>
module attributes {stable_mosaic.version = 11 : i64} {
  func.func @policy_net_kernel(%arg0: i32, %arg1: memref<8x10xf32, #tpu.memory_space<vmem>>, %arg2: memref<10x128xf32, #tpu.memory_space<vmem>>, %arg3: memref<1x128xf32, #tpu.memory_space<vmem>>, %arg4: memref<128x8xf32, #tpu.memory_space<vmem>>, %arg5: memref<1x8xf32, #tpu.memory_space<vmem>>, %arg6: memref<8x8xf32, #tpu.memory_space<vmem>>) attributes {dimension_semantics = [#tpu.dimension_semantics<parallel>], iteration_bounds = array<i64: 1>, scalar_prefetch = 0 : i64, scratch_operands = 0 : i64, tpu.core_type = #tpu.core_type<tc>, window_params = [{transform_indices = @transform_0, window_bounds = array<i64: 8, 10>}, {pipeline_mode = #tpu.pipeline_mode<synchronous>, transform_indices = @transform_1, window_bounds = array<i64: 10, 128>}, {pipeline_mode = #tpu.pipeline_mode<synchronous>, transform_indices = @transform_2, window_bounds = array<i64: 1, 128>}, {pipeline_mode = #tpu.pipeline_mode<synchronous>, transform_indices = @transform_3, window_bounds = array<i64: 128, 8>}, {pipeline_mode = #tpu.pipeline_mode<synchronous>, transform_indices = @transform_4, window_bounds = array<i64: 1, 8>}, {transform_indices = @transform_5, window_bounds = array<i64: 8, 8>}]} {
    %c0 = arith.constant 0 : index
    %c0_0 = arith.constant 0 : index
    %0 = vector.load %arg1[%c0, %c0_0] : memref<8x10xf32, #tpu.memory_space<vmem>>, vector<8x10xf32>
    %c0_1 = arith.constant 0 : index
    %c0_2 = arith.constant 0 : index
    %1 = vector.load %arg2[%c0_1, %c0_2] : memref<10x128xf32, #tpu.memory_space<vmem>>, vector<10x128xf32>
    %cst = arith.constant dense<0.000000e+00> : vector<8x128xf32>
    %2 = tpu.matmul %0, %1, %cst {dimension_numbers = #tpu.dot_dimension_numbers<[1], [0], [0], [1], [0, 0, 1, 1], [], []>} : vector<8x10xf32>, vector<10x128xf32>, vector<8x128xf32> -> vector<8x128xf32>
    %c0_3 = arith.constant 0 : index
    %c0_4 = arith.constant 0 : index
    %3 = vector.load %arg3[%c0_3, %c0_4] : memref<1x128xf32, #tpu.memory_space<vmem>>, vector<1x128xf32>
    %4 = vector.broadcast %3 : vector<1x128xf32> to vector<8x128xf32>
    %5 = arith.addf %2, %4 : vector<8x128xf32>
    %cst_5 = arith.constant 0.000000e+00 : f32
    %6 = vector.broadcast %cst_5 : f32 to vector<8x128xf32>
    %7 = arith.maximumf %5, %6 : vector<8x128xf32>
    %c0_6 = arith.constant 0 : index
    %c0_7 = arith.constant 0 : index
    %8 = vector.load %arg4[%c0_6, %c0_7] : memref<128x8xf32, #tpu.memory_space<vmem>>, vector<128x8xf32>
    %cst_8 = arith.constant dense<0.000000e+00> : vector<8x8xf32>
    %9 = tpu.matmul %7, %8, %cst_8 {dimension_numbers = #tpu.dot_dimension_numbers<[1], [0], [0], [1], [0, 0, 1, 1], [], []>} : vector<8x128xf32>, vector<128x8xf32>, vector<8x8xf32> -> vector<8x8xf32>
    %c0_9 = arith.constant 0 : index
    %c0_10 = arith.constant 0 : index
    %10 = vector.load %arg5[%c0_9, %c0_10] : memref<1x8xf32, #tpu.memory_space<vmem>>, vector<1x8xf32>
    %11 = vector.broadcast %10 : vector<1x8xf32> to vector<8x8xf32>
    %12 = arith.addf %9, %11 : vector<8x8xf32>
    %cst_11 = arith.constant dense<0xFF800000> : vector<8xf32>
    %13 = vector.multi_reduction <maximumf>, %12, %cst_11 [1] : vector<8x8xf32> to vector<8xf32>
    %14 = vector.shape_cast %13 : vector<8xf32> to vector<8x1xf32>
    %15 = vector.broadcast %14 : vector<8x1xf32> to vector<8x8xf32>
    %16 = arith.subf %12, %15 : vector<8x8xf32>
    %17 = math.exp %16 : vector<8x8xf32>
    %cst_12 = arith.constant dense<0.000000e+00> : vector<8xf32>
    %18 = vector.multi_reduction <add>, %17, %cst_12 [1] : vector<8x8xf32> to vector<8xf32>
    %19 = vector.shape_cast %18 : vector<8xf32> to vector<8x1xf32>
    %20 = tpu.reciprocal %19 : vector<8x1xf32> -> vector<8x1xf32>
    %21 = vector.broadcast %20 : vector<8x1xf32> to vector<8x8xf32>
    %22 = arith.mulf %17, %21 : vector<8x8xf32>
    %c0_13 = arith.constant 0 : index
    %c0_14 = arith.constant 0 : index
    %23 = vector.load %arg6[%c0_13, %c0_14] : memref<8x8xf32, #tpu.memory_space<vmem>>, vector<8x8xf32>
    tpu.vector_store %arg6[%c0_13, %c0_14], %22 {strides = array<i32>} : memref<8x8xf32, #tpu.memory_space<vmem>>, vector<8x8xf32>,
    return
  }
  func.func @transform_0(%arg0: i32) -> (i32, i32) {
    %c0_i32 = arith.constant 0 : i32
    %c0_i32_0 = arith.constant 0 : i32
    return %arg0, %c0_i32 : i32, i32
  }
  func.func @transform_1(%arg0: i32) -> (i32, i32) {
    %c0_i32 = arith.constant 0 : i32
    %c0_i32_0 = arith.constant 0 : i32
    %c0_i32_1 = arith.constant 0 : i32
    return %c0_i32, %c0_i32_0 : i32, i32
  }
  func.func @transform_2(%arg0: i32) -> (i32, i32) {
    %c0_i32 = arith.constant 0 : i32
    %c0_i32_0 = arith.constant 0 : i32
    %c0_i32_1 = arith.constant 0 : i32
    return %c0_i32, %c0_i32_0 : i32, i32
  }
  func.func @transform_3(%arg0: i32) -> (i32, i32) {
    %c0_i32 = arith.constant 0 : i32
    %c0_i32_0 = arith.constant 0 : i32
    %c0_i32_1 = arith.constant 0 : i32
    return %c0_i32, %c0_i32_0 : i32, i32
  }
  func.func @transform_4(%arg0: i32) -> (i32, i32) {
    %c0_i32 = arith.constant 0 : i32
    %c0_i32_0 = arith.constant 0 : i32
    %c0_i32_1 = arith.constant 0 : i32
    return %c0_i32, %c0_i32_0 : i32, i32
  }
  func.func @transform_5(%arg0: i32) -> (i32, i32) {
    %c0_i32 = arith.constant 0 : i32
    %c0_i32_0 = arith.constant 0 : i32
    return %arg0, %c0_i32 : i32, i32
  }
}

</mosaic_0001>

<llo_original>
// kernel: tpu_custom_call.1
$region0: #{tpu_custom_call.1}
  #allocation0 [shape = 'u32[]', space=smem, size = 0x4, offset = 0x4, fixed_abs, tag = 'smem constant byte address 0x4 - core index']
  #allocation1 [shape = 'u32[72,128]{1,0:T(1,128)}', space=vmem, size = 0x9000, scoped, tag = 'internal scratch']
  %s0 = inlined_call_operand.vmem [shape: f32[8,10], index: 0, kind: input, shape index: {}]
  %s1 = inlined_call_operand.vmem [shape: f32[10,128], index: 1, kind: input, shape index: {}]
  %s2 = inlined_call_operand.vmem [shape: f32[1,128], index: 2, kind: input, shape index: {}]
  %s3 = inlined_call_operand.vmem [shape: f32[128,8], index: 3, kind: input, shape index: {}]
  %s4 = inlined_call_operand.vmem [shape: f32[1,8], index: 4, kind: input, shape index: {}]
  %s5 = inlined_call_operand.hbm [shape: f32[8,8], index: 5, kind: output, shape index: {}]
  %s6 = sld [smem:[#allocation0]]
  $region30: #{tpu_custom_call.1} parent=0
    _
  %s8 = ssub.s32 1, %s6
  %s9 = scalar_select 0, %s8, %s6
  $region1: #{tpu_custom_call.1} parent=0
    #allocation2 [shape = 'u8[4096]{0}', space=vmem, size = 0x1000, scoped, tag = 'output window, operand 0, single buffered']
    #allocation3 [shape = 's32[1]{0}', space=sflag, size = 0x4, scoped, tag = 'scoped memory for tpu_custom_call.1']
    %10 = vsyncpa [#allocation3], 0
    // Predicated region
    $region2: #{tpu_custom_call.1} parent=1 // pred_check
      _
    $region3: #{tpu_custom_call.1} parent=1 // pred_check_branch
      %12 = sbr.rel (0) target = $region5
    $region4: #{tpu_custom_call.1} parent=1 // pred_region
      _
    $region5: #{tpu_custom_call.1} parent=1 // pred_fallthru
      _
    // Predicated region
    $region6: #{tpu_custom_call.1} parent=1 // pred_check
      _
    $region7: #{tpu_custom_call.1} parent=1 // pred_check_branch
      %14 = sbr.rel (0) target = $region9
    $region8: #{tpu_custom_call.1} parent=1 // pred_region
      _
    $region9: #{tpu_custom_call.1} parent=1 // pred_fallthru
      _
    // Predicated region
    $region10: #{tpu_custom_call.1} parent=1 // pred_check
      _
    $region11: #{tpu_custom_call.1} parent=1 // pred_check_branch
      %16 = sbr.rel (0) target = $region13
    $region12: #{tpu_custom_call.1} parent=1 // pred_region
      _
    $region13: #{tpu_custom_call.1} parent=1 // pred_fallthru
      _
    // Predicated region
    $region14: #{tpu_custom_call.1} parent=1 // pred_check
      _
    $region15: #{tpu_custom_call.1} parent=1 // pred_check_branch
      %18 = sbr.rel (0) target = $region17
    $region16: #{tpu_custom_call.1} parent=1 // pred_region
      _
    $region17: #{tpu_custom_call.1} parent=1 // pred_fallthru
      _
    // Predicated region
    $region18: #{tpu_custom_call.1} parent=1 // pred_check
      _
    $region19: #{tpu_custom_call.1} parent=1 // pred_check_branch
      %20 = sbr.rel (0) target = $region21
    $region20: #{tpu_custom_call.1} parent=1 // pred_region
      _
    $region21: #{tpu_custom_call.1} parent=1 // pred_fallthru
      _
    %v21 = vld [vmem:[%s0] sm:$0xff]
    %v22 = vld [vmem:[%s1] sm:$0xff]
    %v23 = vld [vmem:[%s1 + $0x8] sm:$0x3]
    %v24 = vld [vmem:[%s2] sm:$0x1]
    %v26 = vperm.slane %v24, 0
    %vm28 = vcmask 80896
    %v30 = vsel %vm28, %v21, 0
    %vm32 = vcmask 1041408
    %v34 = vsel %vm32, %v23, 0
    %36 = vmatpush.msra.mxu0 0.0
    %37 = vmatpush.msra.mxu0 0.0
    %38 = vmatpush.msra.mxu0 0.0
    %39 = vmatpush.msra.mxu0 0.0
    %40 = vmatpush.msra.mxu0 0.0
    %41 = vmatpush.msra.mxu0 0.0
    %42 = vmatpush.msra.mxu0 0.0
    %43 = vmatpush.msra.mxu0 0.0
    %44 = vmatpush.msra.mxu0 0.0
    %45 = vmatpush.msra.mxu0 0.0
    %46 = vmatpush.msra.mxu0 0.0
    %47 = vmatpush.msra.mxu0 0.0
    %48 = vmatpush.msra.mxu0 0.0
    %49 = vmatpush.msra.mxu0 0.0
    %50 = vmatpush.msra.mxu0 %v34
    %51 = vmatpush.msra.mxu0 %v22
    %52 = vmatmul.f32.gmra.mxu0 %v30
    %v53 = vpop.f32.mrf.mxu0
    %v54 = vadd.f32 %v26, %v53
    %55 = vdwg.mxu0
    %v56 = vmax.f32 %v54, 0.0
    %v57 = vld [vmem:[%s3] sm:$0xff]
    %v58 = vld [vmem:[%s3 + $0x8] sm:$0xff]
    %v59 = vld [vmem:[%s3 + $0x10] sm:$0xff]
    %v60 = vld [vmem:[%s3 + $0x18] sm:$0xff]
    %v61 = vld [vmem:[%s3 + $0x20] sm:$0xff]
    %v62 = vld [vmem:[%s3 + $0x28] sm:$0xff]
    %v63 = vld [vmem:[%s3 + $0x30] sm:$0xff]
    %v64 = vld [vmem:[%s3 + $0x38] sm:$0xff]
    %v65 = vld [vmem:[%s3 + $0x40] sm:$0xff]
    %v66 = vld [vmem:[%s3 + $0x48] sm:$0xff]
    %v67 = vld [vmem:[%s3 + $0x50] sm:$0xff]
    %v68 = vld [vmem:[%s3 + $0x58] sm:$0xff]
    %v69 = vld [vmem:[%s3 + $0x60] sm:$0xff]
    %v70 = vld [vmem:[%s3 + $0x68] sm:$0xff]
    %v71 = vld [vmem:[%s3 + $0x70] sm:$0xff]
    %v72 = vld [vmem:[%s3 + $0x78] sm:$0xff]
    %v73 = vld [vmem:[%s4] sm:$0x1]
    %v75 = vperm.slane %v73, 0
    %77 = vmatpush.msra.mxu0 %v72
    %78 = vmatpush.msra.mxu0 %v71
    %79 = vmatpush.msra.mxu0 %v70
    %80 = vmatpush.msra.mxu0 %v69
    %81 = vmatpush.msra.mxu0 %v68
    %82 = vmatpush.msra.mxu0 %v67
    %83 = vmatpush.msra.mxu0 %v66
    %84 = vmatpush.msra.mxu0 %v65
    %85 = vmatpush.msra.mxu0 %v64
    %86 = vmatpush.msra.mxu0 %v63
    %87 = vmatpush.msra.mxu0 %v62
    %88 = vmatpush.msra.mxu0 %v61
    %89 = vmatpush.msra.mxu0 %v60
    %90 = vmatpush.msra.mxu0 %v59
    %91 = vmatpush.msra.mxu0 %v58
    %92 = vmatpush.msra.mxu0 %v57
    %93 = vmatmul.f32.gmra.mxu0 %v56
    %v94 = vpop.f32.mrf.mxu0
    %v95 = vadd.f32 %v75, %v94
    %96 = vdwg.mxu0
    %vm97 = vcmask 64512
    %v98 = vsel %vm97, %v95, -inf
    %99 = vmax.xlane.f32.xlu0 %v98
    %v100 = vpop.xlane.xlu0 %99
    %v101 = vsub.f32 %v95, %v100
    %v102 = vmul.f32 %v101, 1.442695
    %v103 = vpow.pop %v102
    %v104 = vsel %vm97, %v103, 0.0
    %105 = vadd.xlane.f32.xlu0 %v104
    %v106 = vpop.xlane.xlu0 %105
    %v107 = vrcp.pop %v106
    %v108 = vmul.f32 %v106, %v107
    %v109 = vsub.f32 1.0, %v108
    %v110 = vmul.f32 %v107, %v109
    %v111 = vadd.f32 %v107, %v110
    %vm112 = vweird.f32 %v106
    %vm113 = vweird.f32 %v107
    %vm114 = vmor %vm112, %vm113
    %v115 = vsel %vm114, %v107, %v111
    %v116 = vand.u32 2147483647, %v106
    %vm117 = vcmp.eq.f32.partialorder %v116, 8.507059e+37
    %v118 = vand.u32 %v106, 2147483648
    %v119 = vor.u32 1.1754944e-38, %v118
    %v120 = vsel %vm117, %v119, %v115
    %v121 = vmul.f32 %v103, %v120
    %122 = vst.msk [vmem:[#allocation2] sm:$0xff] %vm97, %v121
    // Predicated region
    $region22: #{tpu_custom_call.1} parent=1 // pred_check
      _
    $region23: #{tpu_custom_call.1} parent=1 // pred_check_branch
      %124 = sbr.rel (0) target = $region25
    $region24: #{tpu_custom_call.1} parent=1 // pred_region
      %126 = vsyncadd [#allocation3], 0
      %s128 = sshll.u32 [#allocation2], 4
      %s129 = int_to_ptr.vmem [resolvable:$true] %s128
      %s130 = sshll.u32 %s5, 4
      %s131 = int_to_ptr.hbm [resolvable:$true] %s130
      %133 = dma.vmem_to_hbm [thread:$0]  %s129, 128, %s131, [#allocation3]
    $region25: #{tpu_custom_call.1} parent=1 // pred_fallthru
      _
    // Predicated region
    $region26: #{tpu_custom_call.1} parent=1 // pred_check
      _
    $region27: #{tpu_custom_call.1} parent=1 // pred_check_branch
      %135 = sbr.rel (0) target = $region29
    $region28: #{tpu_custom_call.1} parent=1 // pred_region
      %137 = dma.done [#allocation3], 128
    $region29: #{tpu_custom_call.1} parent=1 // pred_fallthru
      _
    %138 = vsyncpa [#allocation3], 1

</llo_original>
